<compile_context>
chip_gen: v6e
topology: v6e:2x2x1
jax: 0.10.0
libtpu: 0.0.40
codegen_flags: <defaults>
</compile_context>

<pallas_src>
import jax
import jax.numpy as jnp
from jax.experimental import pallas as pl
from jax.experimental.pallas import tpu as pltpu


def self_attention_kernel(q_ref, len_ref, w1_ref, w2_ref, o_ref):
    """One grid step = one block of b_blk batch elements.

    q_ref  : (b_blk, T, H)         VMEM, compute dtype
    len_ref: (b_blk, 1, 1) int32   VMEM
    w1_ref : (H//2, H)             VMEM  (PyTorch nn.Linear layout: (out, in))
    w2_ref : (n_out, H//2)         VMEM
    o_ref  : (b_blk, n_out, T)     VMEM, float32
    """
    b_blk, t_len, h_dim = q_ref.shape
    n_out, h_half = w2_ref.shape
    neg_big = jnp.float32(-1e30)  # finite mask: exp underflows to 0, no -inf-(-inf)=NaN

    # ---- first matmul: all b_blk*T rows through the MXU at once ----------
    # (T is a multiple of 8, so merging (b_blk, T) is a free layout op.)
    q2d = q_ref[...].reshape(b_blk * t_len, h_dim)
    h2d = jax.lax.dot_general(q2d, w1_ref[...], (((1,), (1,)), ((), ())),
                              preferred_element_type=jnp.float32)
    h2d = jnp.tanh(h2d)                       # f32 tanh: safe on v5e too
    h2d = h2d.astype(w2_ref.dtype)            # bf16 path: one cast for the MXU

    # ---- second matmul: ONE MXU call for the whole block ------------------
    # (n_out, h_half) x (b_blk*T, h_half)^T -> (n_out, b_blk*T); T stays on lanes.
    s2d = jax.lax.dot_general(w2_ref[...], h2d, (((1,), (1,)), ((), ())),
                              preferred_element_type=jnp.float32)
    s = jnp.transpose(s2d.reshape(n_out, b_blk, t_len), (1, 0, 2))  # (b_blk, n_out, T)

    # ---- vectorized length mask + softmax over T (lane axis) --------------
    t_idx = jax.lax.broadcasted_iota(jnp.int32, (b_blk, n_out, t_len), 2)
    s = jnp.where(t_idx >= len_ref[...], neg_big, s)

    m = jnp.max(s, axis=-1, keepdims=True)
    e = jnp.exp(s - m)
    denom = jnp.sum(e, axis=-1, keepdims=True)
    o_ref[...] = (e / denom).astype(o_ref.dtype)   # exact normalization


def _choose_b_blk(B, T, H, itemsize, target_block_bytes=2 << 20):
    """Batch block from a VMEM budget (~2 MiB of query per step, the pipeline
    double-buffers it).  Keep >= 2 grid steps when B >= 2 so the 'parallel'
    grid axis can be split across v7x's two TensorCores."""
    per_batch = T * H * itemsize
    b_blk = max(1, min(B, target_block_bytes // per_batch))
    if B >= 2 and b_blk >= B:
        b_blk = pl.cdiv(B, 2)
    return int(b_blk)


def self_attention(query, lengths, w1, w2, *, b_blk=None, compute_dtype=jnp.float32):
    """query: (B, T, H), lengths: (B,) int, w1: (H//2, H), w2: (n_out, H//2)
    (PyTorch nn.Linear weight layouts).  Returns float32 (B, n_out, T)."""
    B, T, H = query.shape
    n_out, h_half = w2.shape
    assert h_half == H // 2 and w1.shape == (h_half, H)
    assert lengths.shape == (B,)

    # bf16 inputs on v6e/v7x halve HBM traffic and use the full-rate MXU path;
    # in-kernel accumulation is always f32.
    query = query.astype(compute_dtype)
    w1 = w1.astype(compute_dtype)
    w2 = w2.astype(compute_dtype)
    itemsize = jnp.dtype(compute_dtype).itemsize

    if b_blk is None:
        b_blk = _choose_b_blk(B, T, H, itemsize)
    b_blk = int(max(1, min(int(b_blk), B)))
    grid_steps = int(pl.cdiv(B, b_blk))
    B_pad = grid_steps * b_blk

    if B_pad != B:  # pad the batch instead of requiring b_blk | B
        query = jnp.pad(query, ((0, B_pad - B), (0, 0), (0, 0)))
        lengths = jnp.pad(lengths, ((0, B_pad - B),))  # padded rows fully masked
    lens3d = lengths.astype(jnp.int32).reshape(B_pad, 1, 1)

    # Explicit scoped-VMEM budget: double-buffered q/len/out blocks + weights.
    q_blk_bytes = b_blk * T * H * itemsize
    o_blk_bytes = b_blk * n_out * T * 4
    w_bytes = (h_half * H + n_out * h_half) * itemsize
    needed = 2 * (q_blk_bytes + o_blk_bytes + b_blk * 4) + 2 * w_bytes
    vmem_limit = int(min(max(2 * needed, 16 << 20), 64 << 20))

    def run(single_buffer_weights):
        def const_spec(shape):
            idx = lambda b: (0,) * len(shape)
            if single_buffer_weights:
                # Weights never change across the grid: hold a single VMEM copy.
                return pl.BlockSpec(shape, idx, pipeline_mode=pl.Buffered(1))
            return pl.BlockSpec(shape, idx)

        return pl.pallas_call(
            self_attention_kernel,
            out_shape=jax.ShapeDtypeStruct((B_pad, n_out, T), jnp.float32),
            grid_spec=pltpu.PrefetchScalarGridSpec(
                num_scalar_prefetch=0,
                grid=(grid_steps,),
                in_specs=[
                    pl.BlockSpec((b_blk, T, H), lambda b: (b, 0, 0)),
                    pl.BlockSpec((b_blk, 1, 1), lambda b: (b, 0, 0)),
                    const_spec((h_half, H)),
                    const_spec((n_out, h_half)),
                ],
                out_specs=pl.BlockSpec((b_blk, n_out, T), lambda b: (b, 0, 0)),
            ),
            compiler_params=pltpu.CompilerParams(
                dimension_semantics=("parallel",),
                vmem_limit_bytes=vmem_limit),
        )(query, lens3d, w1, w2)

    try:
        out = run(single_buffer_weights=True)
    except Exception:
        # pl.Buffered(1) rejected by this jax/libtpu build: default buffering.
        out = run(single_buffer_weights=False)
    return out[:B]


if __name__ == "__main__":
    B, T, H, N_OUT = 2, 8, 32, 4

    key = jax.random.PRNGKey(0)
    k_q, k_w1, k_w2 = jax.random.split(key, 3)

    query = jax.random.normal(k_q, (B, T, H), dtype=jnp.float32)
    # deterministic "Linear" weights, PyTorch layout (out_features, in_features)
    w1 = jax.random.normal(k_w1, (H // 2, H), dtype=jnp.float32) * 0.1
    w2 = jax.random.normal(k_w2, (N_OUT, H // 2), dtype=jnp.float32) * 0.1
    lengths = jnp.array([8, 5], dtype=jnp.int32)

    out = jax.block_until_ready(self_attention(query, lengths, w1, w2))

    # pure-JAX reference mirroring the PyTorch forward
    h_ref = jnp.tanh(jnp.einsum("bth,kh->btk", query, w1))
    ref_scores = jnp.einsum("ok,btk->bot", w2, h_ref)
    t_idx = jnp.arange(T)[None, None, :]
    ref_scores = jnp.where(t_idx >= lengths[:, None, None], -jnp.inf, ref_scores)
    ref = jax.nn.softmax(ref_scores, axis=2)

    assert out.shape == (B, N_OUT, T)
    assert bool(jnp.all(jnp.isfinite(out)))
    max_err = float(jnp.max(jnp.abs(out - ref)))
    # softmax normalization is exact now; remaining tolerance covers MXU
    # default-precision matmuls vs the XLA f32 reference.
    assert jnp.allclose(out, ref, atol=2e-3, rtol=2e-3), max_err

    print("KERNEL_OK")
</pallas_src>

<mosaic_0001>
module attributes {stable_mosaic.version = 11 : i64} {
  func.func @self_attention_kernel(%arg0: i32, %arg1: memref<1x8x32xf32, #tpu.memory_space<vmem>>, %arg2: memref<1x1x1xi32, #tpu.memory_space<vmem>>, %arg3: memref<16x32xf32, #tpu.memory_space<vmem>>, %arg4: memref<4x16xf32, #tpu.memory_space<vmem>>, %arg5: memref<1x4x8xf32, #tpu.memory_space<vmem>>) attributes {dimension_semantics = [#tpu.dimension_semantics<parallel>], iteration_bounds = array<i64: 2>, scalar_prefetch = 0 : i64, scratch_operands = 0 : i64, tpu.core_type = #tpu.core_type<tc>, window_params = [{transform_indices = @transform_0, window_bounds = array<i64: 1, 8, 32>}, {transform_indices = @transform_1, window_bounds = array<i64: 1, 1, 1>}, {pipeline_mode = #tpu.pipeline_mode<synchronous>, transform_indices = @transform_2, window_bounds = array<i64: 16, 32>}, {pipeline_mode = #tpu.pipeline_mode<synchronous>, transform_indices = @transform_3, window_bounds = array<i64: 4, 16>}, {transform_indices = @transform_4, window_bounds = array<i64: 1, 4, 8>}]} {
    %c0 = arith.constant 0 : index
    %c0_0 = arith.constant 0 : index
    %c0_1 = arith.constant 0 : index
    %0 = vector.load %arg1[%c0, %c0_0, %c0_1] : memref<1x8x32xf32, #tpu.memory_space<vmem>>, vector<1x8x32xf32>
    %1 = vector.shape_cast %0 : vector<1x8x32xf32> to vector<8x32xf32>
    %c0_2 = arith.constant 0 : index
    %c0_3 = arith.constant 0 : index
    %2 = vector.load %arg3[%c0_2, %c0_3] : memref<16x32xf32, #tpu.memory_space<vmem>>, vector<16x32xf32>
    %cst = arith.constant dense<0.000000e+00> : vector<8x16xf32>
    %3 = tpu.matmul %1, %2, %cst {dimension_numbers = #tpu.dot_dimension_numbers<[1], [1], [0], [0], [0, 0, 1, 0], [], []>} : vector<8x32xf32>, vector<16x32xf32>, vector<8x16xf32> -> vector<8x16xf32>
    %4 = math.tanh %3 : vector<8x16xf32>
    %c0_4 = arith.constant 0 : index
    %c0_5 = arith.constant 0 : index
    %5 = vector.load %arg4[%c0_4, %c0_5] : memref<4x16xf32, #tpu.memory_space<vmem>>, vector<4x16xf32>
    %cst_6 = arith.constant dense<0.000000e+00> : vector<4x8xf32>
    %6 = tpu.matmul %5, %4, %cst_6 {dimension_numbers = #tpu.dot_dimension_numbers<[1], [1], [0], [0], [0, 0, 1, 0], [], []>} : vector<4x16xf32>, vector<8x16xf32>, vector<4x8xf32> -> vector<4x8xf32>
    %7 = vector.shape_cast %6 : vector<4x8xf32> to vector<4x1x8xf32>
    %8 = tpu.transpose %7, [1, 0, 2] : vector<4x1x8xf32> -> vector<1x4x8xf32>
    %9 = tpu.iota {dimensions = array<i32: 2>} : vector<1x4x8xi32>
    %c0_7 = arith.constant 0 : index
    %c0_8 = arith.constant 0 : index
    %c0_9 = arith.constant 0 : index
    %10 = vector.load %arg2[%c0_7, %c0_8, %c0_9] : memref<1x1x1xi32, #tpu.memory_space<vmem>>, vector<1x1x1xi32>
    %11 = vector.broadcast %10 : vector<1x1x1xi32> to vector<1x4x8xi32>
    %12 = arith.cmpi sge, %9, %11 : vector<1x4x8xi32>
    %cst_10 = arith.constant -1.000000e+30 : f32
    %13 = vector.broadcast %cst_10 : f32 to vector<1x4x8xf32>
    %14 = arith.select %12, %13, %8 : vector<1x4x8xi1>, vector<1x4x8xf32>
    %cst_11 = arith.constant dense<0xFF800000> : vector<1x4xf32>
    %15 = vector.multi_reduction <maximumf>, %14, %cst_11 [2] : vector<1x4x8xf32> to vector<1x4xf32>
    %16 = vector.shape_cast %15 : vector<1x4xf32> to vector<1x4x1xf32>
    %17 = vector.broadcast %16 : vector<1x4x1xf32> to vector<1x4x8xf32>
    %18 = arith.subf %14, %17 : vector<1x4x8xf32>
    %19 = math.exp %18 : vector<1x4x8xf32>
    %cst_12 = arith.constant dense<0.000000e+00> : vector<1x4xf32>
    %20 = vector.multi_reduction <add>, %19, %cst_12 [2] : vector<1x4x8xf32> to vector<1x4xf32>
    %21 = vector.shape_cast %20 : vector<1x4xf32> to vector<1x4x1xf32>
    %22 = vector.broadcast %21 : vector<1x4x1xf32> to vector<1x4x8xf32>
    %23 = arith.divf %19, %22 : vector<1x4x8xf32>
    %c0_13 = arith.constant 0 : index
    %c0_14 = arith.constant 0 : index
    %c0_15 = arith.constant 0 : index
    %24 = vector.load %arg5[%c0_13, %c0_14, %c0_15] : memref<1x4x8xf32, #tpu.memory_space<vmem>>, vector<1x4x8xf32>
    tpu.vector_store %arg5[%c0_13, %c0_14, %c0_15], %23 {strides = array<i32>} : memref<1x4x8xf32, #tpu.memory_space<vmem>>, vector<1x4x8xf32>,
    return
  }
  func.func @transform_0(%arg0: i32) -> (i32, i32, i32) {
    %c0_i32 = arith.constant 0 : i32
    %c0_i32_0 = arith.constant 0 : i32
    %c0_i32_1 = arith.constant 0 : i32
    return %arg0, %c0_i32, %c0_i32_0 : i32, i32, i32
  }
  func.func @transform_1(%arg0: i32) -> (i32, i32, i32) {
    %c0_i32 = arith.constant 0 : i32
    %c0_i32_0 = arith.constant 0 : i32
    %c0_i32_1 = arith.constant 0 : i32
    return %arg0, %c0_i32, %c0_i32_0 : i32, i32, i32
  }
  func.func @transform_2(%arg0: i32) -> (i32, i32) {
    %c0_i32 = arith.constant 0 : i32
    %c0_i32_0 = arith.constant 0 : i32
    %c0_i32_1 = arith.constant 0 : i32
    return %c0_i32, %c0_i32_0 : i32, i32
  }
  func.func @transform_3(%arg0: i32) -> (i32, i32) {
    %c0_i32 = arith.constant 0 : i32
    %c0_i32_0 = arith.constant 0 : i32
    %c0_i32_1 = arith.constant 0 : i32
    return %c0_i32, %c0_i32_0 : i32, i32
  }
  func.func @transform_4(%arg0: i32) -> (i32, i32, i32) {
    %c0_i32 = arith.constant 0 : i32
    %c0_i32_0 = arith.constant 0 : i32
    %c0_i32_1 = arith.constant 0 : i32
    return %arg0, %c0_i32, %c0_i32_0 : i32, i32, i32
  }
}

module attributes {stable_mosaic.version = 11 : i64} {
  func.func @self_attention_kernel(%arg0: i32, %arg1: memref<1x8x32xf32, #tpu.memory_space<vmem>>, %arg2: memref<1x1x1xi32, #tpu.memory_space<vmem>>, %arg3: memref<16x32xf32, #tpu.memory_space<vmem>>, %arg4: memref<4x16xf32, #tpu.memory_space<vmem>>, %arg5: memref<1x4x8xf32, #tpu.memory_space<vmem>>) attributes {dimension_semantics = [#tpu.dimension_semantics<parallel>], iteration_bounds = array<i64: 2>, scalar_prefetch = 0 : i64, scratch_operands = 0 : i64, tpu.core_type = #tpu.core_type<tc>, window_params = [{transform_indices = @transform_0, window_bounds = array<i64: 1, 8, 32>}, {transform_indices = @transform_1, window_bounds = array<i64: 1, 1, 1>}, {pipeline_mode = #tpu.pipeline_mode<synchronous>, transform_indices = @transform_2, window_bounds = array<i64: 16, 32>}, {pipeline_mode = #tpu.pipeline_mode<synchronous>, transform_indices = @transform_3, window_bounds = array<i64: 4, 16>}, {transform_indices = @transform_4, window_bounds = array<i64: 1, 4, 8>}]} {
    %c0 = arith.constant 0 : index
    %c0_0 = arith.constant 0 : index
    %c0_1 = arith.constant 0 : index
    %0 = vector.load %arg1[%c0, %c0_0, %c0_1] : memref<1x8x32xf32, #tpu.memory_space<vmem>>, vector<1x8x32xf32>
    %1 = vector.shape_cast %0 : vector<1x8x32xf32> to vector<8x32xf32>
    %c0_2 = arith.constant 0 : index
    %c0_3 = arith.constant 0 : index
    %2 = vector.load %arg3[%c0_2, %c0_3] : memref<16x32xf32, #tpu.memory_space<vmem>>, vector<16x32xf32>
    %cst = arith.constant dense<0.000000e+00> : vector<8x16xf32>
    %3 = tpu.matmul %1, %2, %cst {dimension_numbers = #tpu.dot_dimension_numbers<[1], [1], [0], [0], [0, 0, 1, 0], [], []>} : vector<8x32xf32>, vector<16x32xf32>, vector<8x16xf32> -> vector<8x16xf32>
    %4 = math.tanh %3 : vector<8x16xf32>
    %c0_4 = arith.constant 0 : index
    %c0_5 = arith.constant 0 : index
    %5 = vector.load %arg4[%c0_4, %c0_5] : memref<4x16xf32, #tpu.memory_space<vmem>>, vector<4x16xf32>
    %cst_6 = arith.constant dense<0.000000e+00> : vector<4x8xf32>
    %6 = tpu.matmul %5, %4, %cst_6 {dimension_numbers = #tpu.dot_dimension_numbers<[1], [1], [0], [0], [0, 0, 1, 0], [], []>} : vector<4x16xf32>, vector<8x16xf32>, vector<4x8xf32> -> vector<4x8xf32>
    %7 = vector.shape_cast %6 : vector<4x8xf32> to vector<4x1x8xf32>
    %8 = tpu.transpose %7, [1, 0, 2] : vector<4x1x8xf32> -> vector<1x4x8xf32>
    %9 = tpu.iota {dimensions = array<i32: 2>} : vector<1x4x8xi32>
    %c0_7 = arith.constant 0 : index
    %c0_8 = arith.constant 0 : index
    %c0_9 = arith.constant 0 : index
    %10 = vector.load %arg2[%c0_7, %c0_8, %c0_9] : memref<1x1x1xi32, #tpu.memory_space<vmem>>, vector<1x1x1xi32>
    %11 = vector.broadcast %10 : vector<1x1x1xi32> to vector<1x4x8xi32>
    %12 = arith.cmpi sge, %9, %11 : vector<1x4x8xi32>
    %cst_10 = arith.constant -1.000000e+30 : f32
    %13 = vector.broadcast %cst_10 : f32 to vector<1x4x8xf32>
    %14 = arith.select %12, %13, %8 : vector<1x4x8xi1>, vector<1x4x8xf32>
    %cst_11 = arith.constant dense<0xFF800000> : vector<1x4xf32>
    %15 = vector.multi_reduction <maximumf>, %14, %cst_11 [2] : vector<1x4x8xf32> to vector<1x4xf32>
    %16 = vector.shape_cast %15 : vector<1x4xf32> to vector<1x4x1xf32>
    %17 = vector.broadcast %16 : vector<1x4x1xf32> to vector<1x4x8xf32>
    %18 = arith.subf %14, %17 : vector<1x4x8xf32>
    %19 = math.exp %18 : vector<1x4x8xf32>
    %cst_12 = arith.constant dense<0.000000e+00> : vector<1x4xf32>
    %20 = vector.multi_reduction <add>, %19, %cst_12 [2] : vector<1x4x8xf32> to vector<1x4xf32>
    %21 = vector.shape_cast %20 : vector<1x4xf32> to vector<1x4x1xf32>
    %22 = vector.broadcast %21 : vector<1x4x1xf32> to vector<1x4x8xf32>
    %23 = arith.divf %19, %22 : vector<1x4x8xf32>
    %c0_13 = arith.constant 0 : index
    %c0_14 = arith.constant 0 : index
    %c0_15 = arith.constant 0 : index
    %24 = vector.load %arg5[%c0_13, %c0_14, %c0_15] : memref<1x4x8xf32, #tpu.memory_space<vmem>>, vector<1x4x8xf32>
    tpu.vector_store %arg5[%c0_13, %c0_14, %c0_15], %23 {strides = array<i32>} : memref<1x4x8xf32, #tpu.memory_space<vmem>>, vector<1x4x8xf32>,
    return
  }
  func.func @transform_0(%arg0: i32) -> (i32, i32, i32) {
    %c0_i32 = arith.constant 0 : i32
    %c0_i32_0 = arith.constant 0 : i32
    %c0_i32_1 = arith.constant 0 : i32
    return %arg0, %c0_i32, %c0_i32_0 : i32, i32, i32
  }
  func.func @transform_1(%arg0: i32) -> (i32, i32, i32) {
    %c0_i32 = arith.constant 0 : i32
    %c0_i32_0 = arith.constant 0 : i32
    %c0_i32_1 = arith.constant 0 : i32
    return %arg0, %c0_i32, %c0_i32_0 : i32, i32, i32
  }
  func.func @transform_2(%arg0: i32) -> (i32, i32) {
    %c0_i32 = arith.constant 0 : i32
    %c0_i32_0 = arith.constant 0 : i32
    %c0_i32_1 = arith.constant 0 : i32
    return %c0_i32, %c0_i32_0 : i32, i32
  }
  func.func @transform_3(%arg0: i32) -> (i32, i32) {
    %c0_i32 = arith.constant 0 : i32
    %c0_i32_0 = arith.constant 0 : i32
    %c0_i32_1 = arith.constant 0 : i32
    return %c0_i32, %c0_i32_0 : i32, i32
  }
  func.func @transform_4(%arg0: i32) -> (i32, i32, i32) {
    %c0_i32 = arith.constant 0 : i32
    %c0_i32_0 = arith.constant 0 : i32
    %c0_i32_1 = arith.constant 0 : i32
    return %arg0, %c0_i32, %c0_i32_0 : i32, i32, i32
  }
}

</mosaic_0001>

<llo_original>
// kernel: tpu_custom_call.1
$region0: #{tpu_custom_call.1}
  #allocation0 [shape = 'u32[]', space=smem, size = 0x4, offset = 0x4, fixed_abs, tag = 'smem constant byte address 0x4 - core index']
  #allocation1 [shape = 'u32[144,128]{1,0:T(1,128)}', space=vmem, size = 0x12000, scoped, tag = 'internal scratch']
  %s0 = inlined_call_operand.hbm [shape: f32[2,8,32], index: 0, kind: input, shape index: {}]
  %s1 = inlined_call_operand.vmem [shape: s32[2,1,1], index: 1, kind: input, shape index: {}]
  %s2 = inlined_call_operand.hbm [shape: f32[16,32], index: 2, kind: input, shape index: {}]
  %s3 = inlined_call_operand.vmem [shape: f32[4,16], index: 3, kind: input, shape index: {}]
  %s4 = inlined_call_operand.hbm [shape: f32[2,4,8], index: 4, kind: output, shape index: {}]
  %s5 = sld [smem:[#allocation0]]
  $region57: #{tpu_custom_call.1} parent=0
    _
  %s7 = ssub.s32 1, %s5
  %s8 = scalar_select 0, %s7, %s5
  $region1: #{tpu_custom_call.1} parent=0
    #allocation2 [shape = 'u8[8192]{0}', space=vmem, size = 0x2000, scoped, tag = 'input window, operand 0']
    #allocation3 [shape = 's32[2]{0}', space=sflag, size = 0x8, scoped, tag = 'scoped memory for tpu_custom_call.1']
    #allocation4 [shape = 's32[2]{0}', space=sflag, size = 0x8, scoped, tag = 'scoped memory for tpu_custom_call.1']
    #allocation5 [shape = 'u8[8192]{0}', space=vmem, size = 0x2000, scoped, tag = 'input window, operand 2, single buffered']
    #allocation6 [shape = 's32[1]{0}', space=sflag, size = 0x4, scoped, tag = 'scoped memory for tpu_custom_call.1']
    #allocation7 [shape = 'u8[4096]{0}', space=vmem, size = 0x1000, scoped, tag = 'output window, operand 0']
    %9 = vsyncpa [#allocation3], 0
    %s10 = scalar_lea.sflag [#allocation3], 1
    %11 = vsyncpa %s10, 0
    %12 = vsyncpa [#allocation6], 0
    %13 = vsyncpa [#allocation4], 0
    %s14 = scalar_lea.sflag [#allocation4], 1
    %15 = vsyncpa %s14, 0
    loop: start=0, step=1, limit=4
    $region2: #{tpu_custom_call.1} parent=1 // loop_pre_header
      _
    $region3: #{tpu_custom_call.1} parent=1 // loop_header
      %s17 = sphi 0, %s21
      %p18 = scmp.ge.s32.totalorder %s17, 4
      %s27 = sphi 0, %s29
      %s30 = sphi 0, %s27
      %s31 = sphi 0, %s30
      %s47 = sphi 0, %s31
      %s53 = sphi 0, %s55
      %s56 = sphi 0, %s53
      %s57 = sphi 0, %s56
      %s73 = sphi 0, %s57
      %s77 = sphi 0, %s77
      %s79 = sphi 0, %s77
      %s80 = sphi 0, %s79
      %s94 = sphi 0, %s80
      %s98 = sphi 0, %s98
      %s100 = sphi 0, %s98
      %s101 = sphi 0, %s100
      %s115 = sphi 0, %s101
      %s121 = sphi 0, %s123
      %s124 = sphi 0, %s121
      %s125 = sphi 0, %s124
      %s141 = sphi 0, %s125
    $region4: #{tpu_custom_call.1} parent=1 // loop_header_branch
      %20 = sbr.rel (%p18) target = $region8
    $region5: #{tpu_custom_call.1} parent=1 // loop_body
      %s22 = ssub.s32 %s17, 1
      %s23 = ssub.s32 %s17, 2
      %s24 = sadd.s32 %s17, 1
      %s25 = ssub.s32 %s17, %s24
      %p26 = scmp.eq.s32.totalorder %s25, 0
      %s28 = sadd.s32 %s27, 1
      %s29 = scalar_select %p26, %s27, %s28
      %p32 = pneg %p26
      %p33 = scmp.eq.s32.totalorder %s17, 1
      %p34 = por %p32, %p33
      %p35 = scmp.ne.s32.totalorder %s27, %s30
      %p36 = scmp.eq.s32.totalorder %s17, 0
      %p37 = por %p35, %p36
      %p38 = scmp.ne.s32.totalorder %s27, %s30
      %p39 = scmp.eq.s32.totalorder %s22, 1
      %p40 = por %p38, %p39
      %p41 = scmp.ne.s32.totalorder %s30, %s31
      %p42 = scmp.eq.s32.totalorder %s22, 0
      %p43 = por %p41, %p42
      %p44 = scmp.ne.s32.totalorder %s30, %s31
      %p45 = scmp.eq.s32.totalorder %s23, 1
      %p46 = por %p44, %p45
      %p48 = scmp.ne.s32.totalorder %s31, %s47
      %p49 = scmp.eq.s32.totalorder %s23, 0
      %p50 = por %p48, %p49
      %s51 = ssub.s32 %s17, %s24
      %p52 = scmp.eq.s32.totalorder %s51, 0
      %s54 = sadd.s32 %s53, 1
      %s55 = scalar_select %p52, %s53, %s54
      %p58 = pneg %p52
      %p59 = scmp.eq.s32.totalorder %s17, 1
      %p60 = por %p58, %p59
      %p61 = scmp.ne.s32.totalorder %s53, %s56
      %p62 = scmp.eq.s32.totalorder %s17, 0
      %p63 = por %p61, %p62
      %p64 = scmp.ne.s32.totalorder %s53, %s56
      %p65 = scmp.eq.s32.totalorder %s22, 1
      %p66 = por %p64, %p65
      %p67 = scmp.ne.s32.totalorder %s56, %s57
      %p68 = scmp.eq.s32.totalorder %s22, 0
      %p69 = por %p67, %p68
      %p70 = scmp.ne.s32.totalorder %s56, %s57
      %p71 = scmp.eq.s32.totalorder %s23, 1
      %p72 = por %p70, %p71
      %p74 = scmp.ne.s32.totalorder %s57, %s73
      %p75 = scmp.eq.s32.totalorder %s23, 0
      %p76 = por %p74, %p75
      %s78 = sadd.s32 %s77, 1
      %p81 = scmp.eq.s32.totalorder %s17, 1
      %p82 = scmp.ne.s32.totalorder %s77, %s79
      %p83 = scmp.eq.s32.totalorder %s17, 0
      %p84 = por %p82, %p83
      %p85 = scmp.ne.s32.totalorder %s77, %s79
      %p86 = scmp.eq.s32.totalorder %s22, 1
      %p87 = por %p85, %p86
      %p88 = scmp.ne.s32.totalorder %s79, %s80
      %p89 = scmp.eq.s32.totalorder %s22, 0
      %p90 = por %p88, %p89
      %p91 = scmp.ne.s32.totalorder %s79, %s80
      %p92 = scmp.eq.s32.totalorder %s23, 1
      %p93 = por %p91, %p92
      %p95 = scmp.ne.s32.totalorder %s80, %s94
      %p96 = scmp.eq.s32.totalorder %s23, 0
      %p97 = por %p95, %p96
      %s99 = sadd.s32 %s98, 1
      %p102 = scmp.eq.s32.totalorder %s17, 1
      %p103 = scmp.ne.s32.totalorder %s98, %s100
      %p104 = scmp.eq.s32.totalorder %s17, 0
      %p105 = por %p103, %p104
      %p106 = scmp.ne.s32.totalorder %s98, %s100
      %p107 = scmp.eq.s32.totalorder %s22, 1
      %p108 = por %p106, %p107
      %p109 = scmp.ne.s32.totalorder %s100, %s101
      %p110 = scmp.eq.s32.totalorder %s22, 0
      %p111 = por %p109, %p110
      %p112 = scmp.ne.s32.totalorder %s100, %s101
      %p113 = scmp.eq.s32.totalorder %s23, 1
      %p114 = por %p112, %p113
      %p116 = scmp.ne.s32.totalorder %s101, %s115
      %p117 = scmp.eq.s32.totalorder %s23, 0
      %p118 = por %p116, %p117
      %s119 = ssub.s32 %s17, %s24
      %p120 = scmp.eq.s32.totalorder %s119, 0
      %s122 = sadd.s32 %s121, 1
      %s123 = scalar_select %p120, %s121, %s122
      %p126 = pneg %p120
      %p127 = scmp.eq.s32.totalorder %s17, 1
      %p128 = por %p126, %p127
      %p129 = scmp.ne.s32.totalorder %s121, %s124
      %p130 = scmp.eq.s32.totalorder %s17, 0
      %p131 = por %p129, %p130
      %p132 = scmp.ne.s32.totalorder %s121, %s124
      %p133 = scmp.eq.s32.totalorder %s22, 1
      %p134 = por %p132, %p133
      %p135 = scmp.ne.s32.totalorder %s124, %s125
      %p136 = scmp.eq.s32.totalorder %s22, 0
      %p137 = por %p135, %p136
      %p138 = scmp.ne.s32.totalorder %s124, %s125
      %p139 = scmp.eq.s32.totalorder %s23, 1
      %p140 = por %p138, %p139
      %p142 = scmp.ne.s32.totalorder %s125, %s141
      %p143 = scmp.eq.s32.totalorder %s23, 0
      %p144 = por %p142, %p143
      %p145 = scmp.le.s32.totalorder 1, %s17
      %p146 = scmp.lt.s32.totalorder %s17, 3
      %p147 = pnand %p145, %p146
      %p148 = pneg %p147
      // Predicated region
      $region9: #{tpu_custom_call.1} parent=5 // pred_check
        _
      $region10: #{tpu_custom_call.1} parent=5 // pred_check_branch
        %150 = sbr.rel (%p147) target = $region12
      $region11: #{tpu_custom_call.1} parent=5 // pred_region
        %s151 = ssub.s32 %s17, 1
        // Predicated region
        $region13: #{tpu_custom_call.1} parent=11 // pred_check
          %p152 = pneg %p90
        $region14: #{tpu_custom_call.1} parent=11 // pred_check_branch
          %154 = sbr.rel (%p152) target = $region16
        $region15: #{tpu_custom_call.1} parent=11 // pred_region
          %s156 = ssub.s32 256, 256
          %157 = vsyncadd [#allocation6], %s156
          %s158 = sshll.u32 [#allocation5], 4
          %s159 = int_to_ptr.vmem [resolvable:$true] %s158
          %164 = dma.hbm_to_vmem [thread:$0]  %s2, 256, %s159, [#allocation6], 128, 128, 8
        $region16: #{tpu_custom_call.1} parent=11 // pred_fallthru
          _
        // Predicated region
        $region17: #{tpu_custom_call.1} parent=11 // pred_check
          %p165 = pneg %p111
        $region18: #{tpu_custom_call.1} parent=11 // pred_check_branch
          %167 = sbr.rel (%p165) target = $region20
        $region19: #{tpu_custom_call.1} parent=11 // pred_region
          _
        $region20: #{tpu_custom_call.1} parent=11 // pred_fallthru
          _
      $region12: #{tpu_custom_call.1} parent=5 // pred_fallthru
        _
      %p168 = scmp.lt.s32.totalorder %s17, 2
      // Predicated region
      $region21: #{tpu_custom_call.1} parent=5 // pred_check
        %p169 = pneg %p168
      $region22: #{tpu_custom_call.1} parent=5 // pred_check_branch
        %171 = sbr.rel (%p169) target = $region24
      $region23: #{tpu_custom_call.1} parent=5 // pred_region
        // Predicated region
        $region25: #{tpu_custom_call.1} parent=23 // pred_check
          %p172 = pneg %p37
        $region26: #{tpu_custom_call.1} parent=23 // pred_check_branch
          %174 = sbr.rel (%p172) target = $region28
        $region27: #{tpu_custom_call.1} parent=23 // pred_region
          %s175 = sand.u32 %s27, 1
          %s176 = scalar_lea.sflag [#allocation3], %s175
          %s177 = sand.u32 %s27, 1
          %s178 = smul.addr %s177, 8
          %s179 = scalar_lea.vmem [#allocation2], %s178
          %s181 = ssub.s32 128, 128
          %182 = vsyncadd %s176, %s181
          %s183 = smul.addr %s17, 128
          %s184 = scalar_lea.hbm %s0, %s183
          %s186 = sshll.u32 %s179, 4
          %s187 = int_to_ptr.vmem [resolvable:$true] %s186
          %189 = dma.hbm_to_vmem [thread:$0]  %s184, 128, %s187, %s176
        $region28: #{tpu_custom_call.1} parent=23 // pred_fallthru
          _
        // Predicated region
        $region29: #{tpu_custom_call.1} parent=23 // pred_check
          %p190 = pneg %p63
        $region30: #{tpu_custom_call.1} parent=23 // pred_check_branch
          %192 = sbr.rel (%p190) target = $region32
        $region31: #{tpu_custom_call.1} parent=23 // pred_region
          %p193 = scmp.lt.s32.totalorder %s17, 1
          %s194 = scalar_select %p193, %s17, 1
          %s195 = scalar_lea.vmem %s1, %s194
        $region32: #{tpu_custom_call.1} parent=23 // pred_fallthru
          _
      $region24: #{tpu_custom_call.1} parent=5 // pred_fallthru
        _
      %p196 = scmp.le.s32.totalorder 1, %s17
      %p197 = scmp.lt.s32.totalorder %s17, 3
      %p198 = pnand %p196, %p197
      %p199 = pneg %p198
      // Predicated region
      $region33: #{tpu_custom_call.1} parent=5 // pred_check
        _
      $region34: #{tpu_custom_call.1} parent=5 // pred_check_branch
        %201 = sbr.rel (%p198) target = $region36
      $region35: #{tpu_custom_call.1} parent=5 // pred_region
        %s202 = ssub.s32 %s17, 1
        %s203 = sand.u32 %s30, 1
        %s204 = scalar_lea.sflag [#allocation3], %s203
        %s205 = sand.u32 %s30, 1
        %s206 = smul.addr %s205, 8
        %s207 = scalar_lea.vmem [#allocation2], %s206
        // Predicated region
        $region37: #{tpu_custom_call.1} parent=35 // pred_check
          %p208 = pneg %p43
        $region38: #{tpu_custom_call.1} parent=35 // pred_check_branch
          %210 = sbr.rel (%p208) target = $region40
        $region39: #{tpu_custom_call.1} parent=35 // pred_region
          %211 = dma.done %s204, 128
        $region40: #{tpu_custom_call.1} parent=35 // pred_fallthru
          _
        // Predicated region
        $region41: #{tpu_custom_call.1} parent=35 // pred_check
          %p212 = pneg %p90
        $region42: #{tpu_custom_call.1} parent=35 // pred_check_branch
          %214 = sbr.rel (%p212) target = $region44
        $region43: #{tpu_custom_call.1} parent=35 // pred_region
          %215 = dma.done [#allocation6], 256
        $region44: #{tpu_custom_call.1} parent=35 // pred_fallthru
          _
        %s216 = sand.u32 %s30, 1
        %s217 = scalar_lea.sflag [#allocation3], %s216
        %s218 = sand.u32 %s30, 1
        %s219 = smul.addr %s218, 8
        %s220 = scalar_lea.vmem [#allocation2], %s219
        %p221 = pneg %p43
        %p222 = pneg %p40
        %p223 = scmp.lt.s32.totalorder %s22, 1
        %s224 = scalar_select %p223, %s22, 1
        %s225 = scalar_lea.vmem %s1, %s224
        %p226 = pneg %p69
        %p227 = pneg %p66
        %p228 = pneg %p90
        %p229 = pneg %p87
        %p230 = pneg %p111
        %p231 = pneg %p108
        %p232 = pneg %p137
        %p233 = pneg %p134
        %s234 = sand.u32 %s124, 1
        %s235 = scalar_lea.sflag [#allocation4], %s234
        %s236 = sand.u32 %s124, 1
        %s237 = smul.addr %s236, 4
        %s238 = scalar_lea.vmem [#allocation7], %s237
        %p239 = scmp.lt.s32.totalorder %s22, 1
        %s240 = scalar_select %p239, %s22, 1
        %s241 = scalar_lea.vmem %s1, %s240
        %v242 = vld [vmem:[%s207] sm:$0xff]
        %v243 = vld [vmem:[#allocation5] sm:$0xff]
        %v244 = vld [vmem:[#allocation5 + $0x8] sm:$0xff]
        %vm245 = vcmask 261120
        %v247 = vsel %vm245, %v242, 0
        %v250 = vsel %vm245, %v243, 0
        %v253 = vsel %vm245, %v244, 0
        %255 = vmatprep.subr.mxu0 0.0
        %256 = vmatpush1.xpose.msra.mxu0 0.0
        %257 = vmatprep.subr.mxu0 0.0
        %258 = vmatpush1.xpose.msra.mxu0 0.0
        %259 = vmatprep.subr.mxu0 0.0
        %260 = vmatpush1.xpose.msra.mxu0 0.0
        %261 = vmatprep.subr.mxu0 0.0
        %262 = vmatpush1.xpose.msra.mxu0 0.0
        %263 = vmatprep.subr.mxu0 0.0
        %264 = vmatpush1.xpose.msra.mxu0 0.0
        %265 = vmatprep.subr.mxu0 0.0
        %266 = vmatpush1.xpose.msra.mxu0 0.0
        %267 = vmatprep.subr.mxu0 0.0
        %268 = vmatpush1.xpose.msra.mxu0 0.0
        %269 = vmatprep.subr.mxu0 0.0
        %270 = vmatpush1.xpose.msra.mxu0 0.0
        %271 = vmatprep.subr.mxu0 0.0
        %272 = vmatpush1.xpose.msra.mxu0 0.0
        %273 = vmatprep.subr.mxu0 0.0
        %274 = vmatpush1.xpose.msra.mxu0 0.0
        %275 = vmatprep.subr.mxu0 0.0
        %276 = vmatpush1.xpose.msra.mxu0 0.0
        %277 = vmatprep.subr.mxu0 0.0
        %278 = vmatpush1.xpose.msra.mxu0 0.0
        %279 = vmatprep.subr.mxu0 0.0
        %280 = vmatpush1.xpose.msra.mxu0 0.0
        %281 = vmatprep.subr.mxu0 0.0
        %282 = vmatpush1.xpose.msra.mxu0 0.0
        %283 = vmatprep.subr.mxu0 0.0
        %284 = vmatpush1.xpose.msra.mxu0 %v253
        %285 = vmatprep.subr.mxu0 0.0
        %286 = vmatpush1.xpose.msra.mxu0 %v250
        %287 = vmatprep.subr.mxu0 0.0
        %288 = vmatpush2.xpose.msra.mxu0 0.0
        %289 = vmatprep.subr.mxu0 0.0
        %290 = vmatpush2.xpose.msra.mxu0 0.0
        %291 = vmatprep.subr.mxu0 0.0
        %292 = vmatpush2.xpose.msra.mxu0 0.0
        %293 = vmatprep.subr.mxu0 0.0
        %294 = vmatpush2.xpose.msra.mxu0 0.0
        %295 = vmatprep.subr.mxu0 0.0
        %296 = vmatpush2.xpose.msra.mxu0 0.0
        %297 = vmatprep.subr.mxu0 0.0
        %298 = vmatpush2.xpose.msra.mxu0 0.0
        %299 = vmatprep.subr.mxu0 0.0
        %300 = vmatpush2.xpose.msra.mxu0 0.0
        %301 = vmatprep.subr.mxu0 0.0
        %302 = vmatpush2.xpose.msra.mxu0 0.0
        %303 = vmatprep.subr.mxu0 0.0
        %304 = vmatpush2.xpose.msra.mxu0 0.0
        %305 = vmatprep.subr.mxu0 0.0
        %306 = vmatpush2.xpose.msra.mxu0 0.0
        %307 = vmatprep.subr.mxu0 0.0
        %308 = vmatpush2.xpose.msra.mxu0 0.0
        %309 = vmatprep.subr.mxu0 0.0
        %310 = vmatpush2.xpose.msra.mxu0 0.0
        %311 = vmatprep.subr.mxu0 0.0
        %312 = vmatpush2.xpose.msra.mxu0 0.0
        %313 = vmatprep.subr.mxu0 0.0
        %314 = vmatpush2.xpose.msra.mxu0 0.0
        %315 = vmatprep.subr.mxu0 0.0
        %316 = vmatpush2.xpose.msra.mxu0 0.0
        %317 = vmatprep.subr.mxu0 0.0
        %318 = vmatpush2.xpose.msra.mxu0 0.0
        %319 = vmatprep.mubr.f32.mxu0 0.0
        %320 = vmatmul.mubr.f32.gmra.mxu0 %v247
        %v321 = vpop.f32.mrf.mxu0
        %v322 = vadd.f32 0.0, %v321
        %v323 = vpop.f32.mrf.mxu0
        %324 = vdwg.mxu0
        %v325 = vtanh.pop %v322
        %v326 = vld [vmem:[%s3] sm:$0xf]
        %vm327 = vcmask 130048
        %v329 = vsel %vm327, %v326, 0
        %v332 = vsel %vm327, %v325, 0
        %334 = vmatprep.subr.mxu0 0.0
        %335 = vmatpush1.xpose.msra.mxu0 0.0
        %336 = vmatprep.subr.mxu0 0.0
        %337 = vmatpush1.xpose.msra.mxu0 0.0
        %338 = vmatprep.subr.mxu0 0.0
        %339 = vmatpush1.xpose.msra.mxu0 0.0
        %340 = vmatprep.subr.mxu0 0.0
        %341 = vmatpush1.xpose.msra.mxu0 0.0
        %342 = vmatprep.subr.mxu0 0.0
        %343 = vmatpush1.xpose.msra.mxu0 0.0
        %344 = vmatprep.subr.mxu0 0.0
        %345 = vmatpush1.xpose.msra.mxu0 0.0
        %346 = vmatprep.subr.mxu0 0.0
        %347 = vmatpush1.xpose.msra.mxu0 0.0
        %348 = vmatprep.subr.mxu0 0.0
        %349 = vmatpush1.xpose.msra.mxu0 0.0
        %350 = vmatprep.subr.mxu0 0.0
        %351 = vmatpush1.xpose.msra.mxu0 0.0
        %352 = vmatprep.subr.mxu0 0.0
        %353 = vmatpush1.xpose.msra.mxu0 0.0
        %354 = vmatprep.subr.mxu0 0.0
        %355 = vmatpush1.xpose.msra.mxu0 0.0
        %356 = vmatprep.subr.mxu0 0.0
        %357 = vmatpush1.xpose.msra.mxu0 0.0
        %358 = vmatprep.subr.mxu0 0.0
        %359 = vmatpush1.xpose.msra.mxu0 0.0
        %360 = vmatprep.subr.mxu0 0.0
        %361 = vmatpush1.xpose.msra.mxu0 0.0
        %362 = vmatprep.subr.mxu0 0.0
        %363 = vmatpush1.xpose.msra.mxu0 0.0
        %364 = vmatprep.subr.mxu0 0.0
        %365 = vmatpush1.xpose.msra.mxu0 %v332
        %366 = vmatprep.subr.mxu0 0.0
        %367 = vmatpush2.xpose.msra.mxu0 0.0
        %368 = vmatprep.subr.mxu0 0.0
        %369 = vmatpush2.xpose.msra.mxu0 0.0
        %370 = vmatprep.subr.mxu0 0.0
        %371 = vmatpush2.xpose.msra.mxu0 0.0
        %372 = vmatprep.subr.mxu0 0.0
        %373 = vmatpush2.xpose.msra.mxu0 0.0
        %374 = vmatprep.subr.mxu0 0.0
        %375 = vmatpush2.xpose.msra.mxu0 0.0
        %376 = vmatprep.subr.mxu0 0.0
        %377 = vmatpush2.xpose.msra.mxu0 0.0
        %378 = vmatprep.subr.mxu0 0.0
        %379 = vmatpush2.xpose.msra.mxu0 0.0
        %380 = vmatprep.subr.mxu0 0.0
        %381 = vmatpush2.xpose.msra.mxu0 0.0
        %382 = vmatprep.subr.mxu0 0.0
        %383 = vmatpush2.xpose.msra.mxu0 0.0
        %384 = vmatprep.subr.mxu0 0.0
        %385 = vmatpush2.xpose.msra.mxu0 0.0
        %386 = vmatprep.subr.mxu0 0.0
        %387 = vmatpush2.xpose.msra.mxu0 0.0
        %388 = vmatprep.subr.mxu0 0.0
        %389 = vmatpush2.xpose.msra.mxu0 0.0
        %390 = vmatprep.subr.mxu0 0.0
        %391 = vmatpush2.xpose.msra.mxu0 0.0
        %392 = vmatprep.subr.mxu0 0.0
        %393 = vmatpush2.xpose.msra.mxu0 0.0
        %394 = vmatprep.subr.mxu0 0.0
        %395 = vmatpush2.xpose.msra.mxu0 0.0
        %396 = vmatprep.subr.mxu0 0.0
        %397 = vmatpush2.xpose.msra.mxu0 0.0
        %398 = vmatprep.mubr.f32.mxu0 0.0
        %399 = vmatmul.mubr.f32.gmra.mxu0 %v329
        %v400 = vpop.f32.mrf.mxu0
        %v401 = vadd.f32 0.0, %v400
        %v402 = vpop.f32.mrf.mxu0
        %403 = vdwg.mxu0
        %v406 = vunpack.c.l.s4 1966171168
        %v407 = vunpack.c.0.s8 %v406
        %v408 = vlaneseq
        %v409 = vshrl.u32 %v408, 7
        %v410 = vsub.s32 %v407, %v409
        %v411 = vrot.slane %v401, %v410
        %v412 = vcombine.high %v411, %v411
        %v414 = vunpack.c.l.s4 1966171168
        %v415 = vunpack.c.0.s8 %v414
        %v416 = vlaneseq
        %v417 = vshrl.u32 %v416, 7
        %v418 = vsub.s32 %v415, %v417
        %v419 = vrot.slane %v411, %v418
        %v421 = vunpack.c.l.s4 1966171168
        %v422 = vunpack.c.0.s8 %v421
        %v423 = vlaneseq
        %v424 = vshrl.u32 %v423, 7
        %v425 = vsub.s32 %v422, %v424
        %v426 = vrot.slane %v412, %v425
        %v427 = vcombine.high %v419, %v419
        %v428 = vcombine.high %v426, %v426
        %v429 = vlaneseq
        %v430 = vand.u32 %v429, 127
        %v431 = vld [vmem:[%s241] sm:$0x1]
        %v432 = vlaneseq
        %v433 = vshrl.u32 %v432, 7
        %v434 = vsub.s32 0, %v433
        %v435 = vrot.slane %v431, %v434
        %436 = vset.pattern.permute.xlu0 0
        %437 = vperm.xlu0 %436, %v435
        %v438 = vpop.permute.xlu0 %437
        %vm439 = vcmp.ge.s32.totalorder %v430, %v438
        %v440 = vcombine.low %v419, %v426
        %v441 = vcombine.low %v427, %v428
        %v443 = vunpack.c.l.s4 1966171168
        %v444 = vunpack.c.0.s8 %v443
        %v445 = vlaneseq
        %v446 = vshrl.u32 %v445, 7
        %v447 = vsub.s32 %v444, %v446
        %v448 = vrot.slane %v440, %v447
        %v450 = vunpack.c.l.s4 1966171168
        %v451 = vunpack.c.0.s8 %v450
        %v452 = vlaneseq
        %v453 = vshrl.u32 %v452, 7
        %v454 = vsub.s32 %v451, %v453
        %v455 = vrot.slane %v441, %v454
        %v456 = vcombine.low %v448, %v455
        %v458 = vunpack.c.l.s4 1966171168
        %v459 = vunpack.c.0.s8 %v458
        %v460 = vlaneseq
        %v461 = vshrl.u32 %v460, 7
        %v462 = vsub.s32 %v459, %v461
        %v463 = vrot.slane %v456, %v462
        %v465 = vsel %vm439, -1e+30, %v463
        %vm466 = vcmask 60416
        %v467 = vsel %vm466, %v465, -inf
        %468 = vmax.xlane.f32.xlu0 %v467
        %v469 = vpop.xlane.xlu0 %468
        %v470 = vsub.f32 %v465, %v469
        %v471 = vmul.f32 %v470, 1.442695
        %v472 = vpow.pop %v471
        %v473 = vsel %vm466, %v472, 0.0
        %474 = vadd.xlane.f32.xlu0 %v473
        %v475 = vpop.xlane.xlu0 %474
        %v476 = vrcp.pop %v475
        %v477 = vmul.f32 %v472, %v476
        %478 = vst.msk [vmem:[%s238] sm:$0xf] %vm466, %v477
        %s479 = sand.u32 %s124, 1
        %s480 = scalar_lea.sflag [#allocation4], %s479
        %s481 = sand.u32 %s124, 1
        %s482 = smul.addr %s481, 4
        %s483 = scalar_lea.vmem [#allocation7], %s482
        // Predicated region
        $region45: #{tpu_custom_call.1} parent=35 // pred_check
          %p484 = pneg %p134
        $region46: #{tpu_custom_call.1} parent=35 // pred_check_branch
          %486 = sbr.rel (%p484) target = $region48
        $region47: #{tpu_custom_call.1} parent=35 // pred_region
          %s488 = ssub.s32 64, 64
          %489 = vsyncadd %s480, %s488
          %s490 = smul.addr %s22, 64
          %s491 = scalar_lea.hbm %s4, %s490
          %s493 = sshll.u32 %s483, 4
          %s494 = int_to_ptr.vmem [resolvable:$true] %s493
          %496 = dma.vmem_to_hbm [thread:$0]  %s494, 64, %s491, %s480
        $region48: #{tpu_custom_call.1} parent=35 // pred_fallthru
          _
      $region36: #{tpu_custom_call.1} parent=5 // pred_fallthru
        _
      %p497 = scmp.le.s32.totalorder 2, %s17
      // Predicated region
      $region49: #{tpu_custom_call.1} parent=5 // pred_check
        %p498 = pneg %p497
      $region50: #{tpu_custom_call.1} parent=5 // pred_check_branch
        %500 = sbr.rel (%p498) target = $region52
      $region51: #{tpu_custom_call.1} parent=5 // pred_region
        %s501 = ssub.s32 %s17, 2
        // Predicated region
        $region53: #{tpu_custom_call.1} parent=51 // pred_check
          %p502 = pneg %p140
        $region54: #{tpu_custom_call.1} parent=51 // pred_check_branch
          %504 = sbr.rel (%p502) target = $region56
        $region55: #{tpu_custom_call.1} parent=51 // pred_region
          %s505 = sand.u32 %s125, 1
          %s506 = scalar_lea.sflag [#allocation4], %s505
          %s507 = sand.u32 %s125, 1
          %s508 = smul.addr %s507, 4
          %s509 = scalar_lea.vmem [#allocation7], %s508
          %510 = dma.done %s506, 64
        $region56: #{tpu_custom_call.1} parent=51 // pred_fallthru
          _
      $region52: #{tpu_custom_call.1} parent=5 // pred_fallthru
        _
    $region6: #{tpu_custom_call.1} parent=1 // loop_footer
      %s21 = sadd.s32 1, %s17
    $region7: #{tpu_custom_call.1} parent=1 // loop_footer_branch
      %16 = sbr.rel target = $region3
    $region8: #{tpu_custom_call.1} parent=1 // loop_exit
      _
    %511 = vsyncpa [#allocation3], 1
    %s512 = scalar_lea.sflag [#allocation3], 1
    %513 = vsyncpa %s512, 1
    %514 = vsyncpa [#allocation6], 1
    %515 = vsyncpa [#allocation4], 1
    %s516 = scalar_lea.sflag [#allocation4], 1
    %517 = vsyncpa %s516, 1

// kernel: tpu_custom_call.1
$region0: #{tpu_custom_call.1}
  #allocation0 [shape = 'u32[]', space=smem, size = 0x4, offset = 0x4, fixed_abs, tag = 'smem constant byte address 0x4 - core index']
  #allocation1 [shape = 'u32[144,128]{1,0:T(1,128)}', space=vmem, size = 0x12000, scoped, tag = 'internal scratch']
  %s0 = inlined_call_operand.hbm [shape: f32[2,8,32], index: 0, kind: input, shape index: {}]
  %s1 = inlined_call_operand.vmem [shape: s32[2,1,1], index: 1, kind: input, shape index: {}]
  %s2 = inlined_call_operand.hbm [shape: f32[16,32], index: 2, kind: input, shape index: {}]
  %s3 = inlined_call_operand.vmem [shape: f32[4,16], index: 3, kind: input, shape index: {}]
  %s4 = inlined_call_operand.hbm [shape: f32[2,4,8], index: 4, kind: output, shape index: {}]
  %s5 = sld [smem:[#allocation0]]
  $region57: #{tpu_custom_call.1} parent=0
    _
  %s7 = ssub.s32 1, %s5
  %s8 = scalar_select 0, %s7, %s5
  $region1: #{tpu_custom_call.1} parent=0
    #allocation2 [shape = 'u8[8192]{0}', space=vmem, size = 0x2000, scoped, tag = 'input window, operand 0']
    #allocation3 [shape = 's32[2]{0}', space=sflag, size = 0x8, scoped, tag = 'scoped memory for tpu_custom_call.1']
    #allocation4 [shape = 's32[2]{0}', space=sflag, size = 0x8, scoped, tag = 'scoped memory for tpu_custom_call.1']
    #allocation5 [shape = 'u8[8192]{0}', space=vmem, size = 0x2000, scoped, tag = 'input window, operand 2, single buffered']
    #allocation6 [shape = 's32[1]{0}', space=sflag, size = 0x4, scoped, tag = 'scoped memory for tpu_custom_call.1']
    #allocation7 [shape = 'u8[4096]{0}', space=vmem, size = 0x1000, scoped, tag = 'output window, operand 0']
    %9 = vsyncpa [#allocation3], 0
    %s10 = scalar_lea.sflag [#allocation3], 1
    %11 = vsyncpa %s10, 0
    %12 = vsyncpa [#allocation6], 0
    %13 = vsyncpa [#allocation4], 0
    %s14 = scalar_lea.sflag [#allocation4], 1
    %15 = vsyncpa %s14, 0
    loop: start=0, step=1, limit=4
    $region2: #{tpu_custom_call.1} parent=1 // loop_pre_header
      _
    $region3: #{tpu_custom_call.1} parent=1 // loop_header
      %s17 = sphi 0, %s21
      %p18 = scmp.ge.s32.totalorder %s17, 4
      %s27 = sphi 0, %s29
      %s30 = sphi 0, %s27
      %s31 = sphi 0, %s30
      %s47 = sphi 0, %s31
      %s53 = sphi 0, %s55
      %s56 = sphi 0, %s53
      %s57 = sphi 0, %s56
      %s73 = sphi 0, %s57
      %s77 = sphi 0, %s77
      %s79 = sphi 0, %s77
      %s80 = sphi 0, %s79
      %s94 = sphi 0, %s80
      %s98 = sphi 0, %s98
      %s100 = sphi 0, %s98
      %s101 = sphi 0, %s100
      %s115 = sphi 0, %s101
      %s121 = sphi 0, %s123
      %s124 = sphi 0, %s121
      %s125 = sphi 0, %s124
      %s141 = sphi 0, %s125
    $region4: #{tpu_custom_call.1} parent=1 // loop_header_branch
      %20 = sbr.rel (%p18) target = $region8
    $region5: #{tpu_custom_call.1} parent=1 // loop_body
      %s22 = ssub.s32 %s17, 1
      %s23 = ssub.s32 %s17, 2
      %s24 = sadd.s32 %s17, 1
      %s25 = ssub.s32 %s17, %s24
      %p26 = scmp.eq.s32.totalorder %s25, 0
      %s28 = sadd.s32 %s27, 1
      %s29 = scalar_select %p26, %s27, %s28
      %p32 = pneg %p26
      %p33 = scmp.eq.s32.totalorder %s17, 1
      %p34 = por %p32, %p33
      %p35 = scmp.ne.s32.totalorder %s27, %s30
      %p36 = scmp.eq.s32.totalorder %s17, 0
      %p37 = por %p35, %p36
      %p38 = scmp.ne.s32.totalorder %s27, %s30
      %p39 = scmp.eq.s32.totalorder %s22, 1
      %p40 = por %p38, %p39
      %p41 = scmp.ne.s32.totalorder %s30, %s31
      %p42 = scmp.eq.s32.totalorder %s22, 0
      %p43 = por %p41, %p42
      %p44 = scmp.ne.s32.totalorder %s30, %s31
      %p45 = scmp.eq.s32.totalorder %s23, 1
      %p46 = por %p44, %p45
      %p48 = scmp.ne.s32.totalorder %s31, %s47
      %p49 = scmp.eq.s32.totalorder %s23, 0
      %p50 = por %p48, %p49
      %s51 = ssub.s32 %s17, %s24
      %p52 = scmp.eq.s32.totalorder %s51, 0
      %s54 = sadd.s32 %s53, 1
      %s55 = scalar_select %p52, %s53, %s54
      %p58 = pneg %p52
      %p59 = scmp.eq.s32.totalorder %s17, 1
      %p60 = por %p58, %p59
      %p61 = scmp.ne.s32.totalorder %s53, %s56
      %p62 = scmp.eq.s32.totalorder %s17, 0
      %p63 = por %p61, %p62
      %p64 = scmp.ne.s32.totalorder %s53, %s56
      %p65 = scmp.eq.s32.totalorder %s22, 1
      %p66 = por %p64, %p65
      %p67 = scmp.ne.s32.totalorder %s56, %s57
      %p68 = scmp.eq.s32.totalorder %s22, 0
      %p69 = por %p67, %p68
      %p70 = scmp.ne.s32.totalorder %s56, %s57
      %p71 = scmp.eq.s32.totalorder %s23, 1
      %p72 = por %p70, %p71
      %p74 = scmp.ne.s32.totalorder %s57, %s73
      %p75 = scmp.eq.s32.totalorder %s23, 0
      %p76 = por %p74, %p75
      %s78 = sadd.s32 %s77, 1
      %p81 = scmp.eq.s32.totalorder %s17, 1
      %p82 = scmp.ne.s32.totalorder %s77, %s79
      %p83 = scmp.eq.s32.totalorder %s17, 0
      %p84 = por %p82, %p83
      %p85 = scmp.ne.s32.totalorder %s77, %s79
      %p86 = scmp.eq.s32.totalorder %s22, 1
      %p87 = por %p85, %p86
      %p88 = scmp.ne.s32.totalorder %s79, %s80
      %p89 = scmp.eq.s32.totalorder %s22, 0
      %p90 = por %p88, %p89
      %p91 = scmp.ne.s32.totalorder %s79, %s80
      %p92 = scmp.eq.s32.totalorder %s23, 1
      %p93 = por %p91, %p92
      %p95 = scmp.ne.s32.totalorder %s80, %s94
      %p96 = scmp.eq.s32.totalorder %s23, 0
      %p97 = por %p95, %p96
      %s99 = sadd.s32 %s98, 1
      %p102 = scmp.eq.s32.totalorder %s17, 1
      %p103 = scmp.ne.s32.totalorder %s98, %s100
      %p104 = scmp.eq.s32.totalorder %s17, 0
      %p105 = por %p103, %p104
      %p106 = scmp.ne.s32.totalorder %s98, %s100
      %p107 = scmp.eq.s32.totalorder %s22, 1
      %p108 = por %p106, %p107
      %p109 = scmp.ne.s32.totalorder %s100, %s101
      %p110 = scmp.eq.s32.totalorder %s22, 0
      %p111 = por %p109, %p110
      %p112 = scmp.ne.s32.totalorder %s100, %s101
      %p113 = scmp.eq.s32.totalorder %s23, 1
      %p114 = por %p112, %p113
      %p116 = scmp.ne.s32.totalorder %s101, %s115
      %p117 = scmp.eq.s32.totalorder %s23, 0
      %p118 = por %p116, %p117
      %s119 = ssub.s32 %s17, %s24
      %p120 = scmp.eq.s32.totalorder %s119, 0
      %s122 = sadd.s32 %s121, 1
      %s123 = scalar_select %p120, %s121, %s122
      %p126 = pneg %p120
      %p127 = scmp.eq.s32.totalorder %s17, 1
      %p128 = por %p126, %p127
      %p129 = scmp.ne.s32.totalorder %s121, %s124
      %p130 = scmp.eq.s32.totalorder %s17, 0
      %p131 = por %p129, %p130
      %p132 = scmp.ne.s32.totalorder %s121, %s124
      %p133 = scmp.eq.s32.totalorder %s22, 1
      %p134 = por %p132, %p133
      %p135 = scmp.ne.s32.totalorder %s124, %s125
      %p136 = scmp.eq.s32.totalorder %s22, 0
      %p137 = por %p135, %p136
      %p138 = scmp.ne.s32.totalorder %s124, %s125
      %p139 = scmp.eq.s32.totalorder %s23, 1
      %p140 = por %p138, %p139
      %p142 = scmp.ne.s32.totalorder %s125, %s141
      %p143 = scmp.eq.s32.totalorder %s23, 0
      %p144 = por %p142, %p143
      %p145 = scmp.le.s32.totalorder 1, %s17
      %p146 = scmp.lt.s32.totalorder %s17, 3
      %p147 = pnand %p145, %p146
      %p148 = pneg %p147
      // Predicated region
      $region9: #{tpu_custom_call.1} parent=5 // pred_check
        _
      $region10: #{tpu_custom_call.1} parent=5 // pred_check_branch
        %150 = sbr.rel (%p147) target = $region12
      $region11: #{tpu_custom_call.1} parent=5 // pred_region
        %s151 = ssub.s32 %s17, 1
        // Predicated region
        $region13: #{tpu_custom_call.1} parent=11 // pred_check
          %p152 = pneg %p90
        $region14: #{tpu_custom_call.1} parent=11 // pred_check_branch
          %154 = sbr.rel (%p152) target = $region16
        $region15: #{tpu_custom_call.1} parent=11 // pred_region
          %s156 = ssub.s32 256, 256
          %157 = vsyncadd [#allocation6], %s156
          %s158 = sshll.u32 [#allocation5], 4
          %s159 = int_to_ptr.vmem [resolvable:$true] %s158
          %164 = dma.hbm_to_vmem [thread:$0]  %s2, 256, %s159, [#allocation6], 128, 128, 8
        $region16: #{tpu_custom_call.1} parent=11 // pred_fallthru
          _
        // Predicated region
        $region17: #{tpu_custom_call.1} parent=11 // pred_check
          %p165 = pneg %p111
        $region18: #{tpu_custom_call.1} parent=11 // pred_check_branch
          %167 = sbr.rel (%p165) target = $region20
        $region19: #{tpu_custom_call.1} parent=11 // pred_region
          _
        $region20: #{tpu_custom_call.1} parent=11 // pred_fallthru
          _
      $region12: #{tpu_custom_call.1} parent=5 // pred_fallthru
        _
      %p168 = scmp.lt.s32.totalorder %s17, 2
      // Predicated region
      $region21: #{tpu_custom_call.1} parent=5 // pred_check
        %p169 = pneg %p168
      $region22: #{tpu_custom_call.1} parent=5 // pred_check_branch
        %171 = sbr.rel (%p169) target = $region24
      $region23: #{tpu_custom_call.1} parent=5 // pred_region
        // Predicated region
        $region25: #{tpu_custom_call.1} parent=23 // pred_check
          %p172 = pneg %p37
        $region26: #{tpu_custom_call.1} parent=23 // pred_check_branch
          %174 = sbr.rel (%p172) target = $region28
        $region27: #{tpu_custom_call.1} parent=23 // pred_region
          %s175 = sand.u32 %s27, 1
          %s176 = scalar_lea.sflag [#allocation3], %s175
          %s177 = sand.u32 %s27, 1
          %s178 = smul.addr %s177, 8
          %s179 = scalar_lea.vmem [#allocation2], %s178
          %s181 = ssub.s32 128, 128
          %182 = vsyncadd %s176, %s181
          %s183 = smul.addr %s17, 128
          %s184 = scalar_lea.hbm %s0, %s183
          %s186 = sshll.u32 %s179, 4
          %s187 = int_to_ptr.vmem [resolvable:$true] %s186
          %189 = dma.hbm_to_vmem [thread:$0]  %s184, 128, %s187, %s176
        $region28: #{tpu_custom_call.1} parent=23 // pred_fallthru
          _
        // Predicated region
        $region29: #{tpu_custom_call.1} parent=23 // pred_check
          %p190 = pneg %p63
        $region30: #{tpu_custom_call.1} parent=23 // pred_check_branch
          %192 = sbr.rel (%p190) target = $region32
        $region31: #{tpu_custom_call.1} parent=23 // pred_region
          %p193 = scmp.lt.s32.totalorder %s17, 1
          %s194 = scalar_select %p193, %s17, 1
          %s195 = scalar_lea.vmem %s1, %s194
        $region32: #{tpu_custom_call.1} parent=23 // pred_fallthru
          _
      $region24: #{tpu_custom_call.1} parent=5 // pred_fallthru
        _
      %p196 = scmp.le.s32.totalorder 1, %s17
      %p197 = scmp.lt.s32.totalorder %s17, 3
      %p198 = pnand %p196, %p197
      %p199 = pneg %p198
      // Predicated region
      $region33: #{tpu_custom_call.1} parent=5 // pred_check
        _
      $region34: #{tpu_custom_call.1} parent=5 // pred_check_branch
        %201 = sbr.rel (%p198) target = $region36
      $region35: #{tpu_custom_call.1} parent=5 // pred_region
        %s202 = ssub.s32 %s17, 1
        %s203 = sand.u32 %s30, 1
        %s204 = scalar_lea.sflag [#allocation3], %s203
        %s205 = sand.u32 %s30, 1
        %s206 = smul.addr %s205, 8
        %s207 = scalar_lea.vmem [#allocation2], %s206
        // Predicated region
        $region37: #{tpu_custom_call.1} parent=35 // pred_check
          %p208 = pneg %p43
        $region38: #{tpu_custom_call.1} parent=35 // pred_check_branch
          %210 = sbr.rel (%p208) target = $region40
        $region39: #{tpu_custom_call.1} parent=35 // pred_region
          %211 = dma.done %s204, 128
        $region40: #{tpu_custom_call.1} parent=35 // pred_fallthru
          _
        // Predicated region
        $region41: #{tpu_custom_call.1} parent=35 // pred_check
          %p212 = pneg %p90
        $region42: #{tpu_custom_call.1} parent=35 // pred_check_branch
          %214 = sbr.rel (%p212) target = $region44
        $region43: #{tpu_custom_call.1} parent=35 // pred_region
          %215 = dma.done [#allocation6], 256
        $region44: #{tpu_custom_call.1} parent=35 // pred_fallthru
          _
        %s216 = sand.u32 %s30, 1
        %s217 = scalar_lea.sflag [#allocation3], %s216
        %s218 = sand.u32 %s30, 1
        %s219 = smul.addr %s218, 8
        %s220 = scalar_lea.vmem [#allocation2], %s219
        %p221 = pneg %p43
        %p222 = pneg %p40
        %p223 = scmp.lt.s32.totalorder %s22, 1
        %s224 = scalar_select %p223, %s22, 1
        %s225 = scalar_lea.vmem %s1, %s224
        %p226 = pneg %p69
        %p227 = pneg %p66
        %p228 = pneg %p90
        %p229 = pneg %p87
        %p230 = pneg %p111
        %p231 = pneg %p108
        %p232 = pneg %p137
        %p233 = pneg %p134
        %s234 = sand.u32 %s124, 1
        %s235 = scalar_lea.sflag [#allocation4], %s234
        %s236 = sand.u32 %s124, 1
        %s237 = smul.addr %s236, 4
        %s238 = scalar_lea.vmem [#allocation7], %s237
        %p239 = scmp.lt.s32.totalorder %s22, 1
        %s240 = scalar_select %p239, %s22, 1
        %s241 = scalar_lea.vmem %s1, %s240
        %v242 = vld [vmem:[%s207] sm:$0xff]
        %v243 = vld [vmem:[#allocation5] sm:$0xff]
        %v244 = vld [vmem:[#allocation5 + $0x8] sm:$0xff]
        %vm245 = vcmask 261120
        %v247 = vsel %vm245, %v242, 0
        %v250 = vsel %vm245, %v243, 0
        %v253 = vsel %vm245, %v244, 0
        %255 = vmatprep.subr.mxu0 0.0
        %256 = vmatpush1.xpose.msra.mxu0 0.0
        %257 = vmatprep.subr.mxu0 0.0
        %258 = vmatpush1.xpose.msra.mxu0 0.0
        %259 = vmatprep.subr.mxu0 0.0
        %260 = vmatpush1.xpose.msra.mxu0 0.0
        %261 = vmatprep.subr.mxu0 0.0
        %262 = vmatpush1.xpose.msra.mxu0 0.0
        %263 = vmatprep.subr.mxu0 0.0
        %264 = vmatpush1.xpose.msra.mxu0 0.0
        %265 = vmatprep.subr.mxu0 0.0
        %266 = vmatpush1.xpose.msra.mxu0 0.0
        %267 = vmatprep.subr.mxu0 0.0
        %268 = vmatpush1.xpose.msra.mxu0 0.0
        %269 = vmatprep.subr.mxu0 0.0
        %270 = vmatpush1.xpose.msra.mxu0 0.0
        %271 = vmatprep.subr.mxu0 0.0
        %272 = vmatpush1.xpose.msra.mxu0 0.0
        %273 = vmatprep.subr.mxu0 0.0
        %274 = vmatpush1.xpose.msra.mxu0 0.0
        %275 = vmatprep.subr.mxu0 0.0
        %276 = vmatpush1.xpose.msra.mxu0 0.0
        %277 = vmatprep.subr.mxu0 0.0
        %278 = vmatpush1.xpose.msra.mxu0 0.0
        %279 = vmatprep.subr.mxu0 0.0
        %280 = vmatpush1.xpose.msra.mxu0 0.0
        %281 = vmatprep.subr.mxu0 0.0
        %282 = vmatpush1.xpose.msra.mxu0 0.0
        %283 = vmatprep.subr.mxu0 0.0
        %284 = vmatpush1.xpose.msra.mxu0 %v253
        %285 = vmatprep.subr.mxu0 0.0
        %286 = vmatpush1.xpose.msra.mxu0 %v250
        %287 = vmatprep.subr.mxu0 0.0
        %288 = vmatpush2.xpose.msra.mxu0 0.0
        %289 = vmatprep.subr.mxu0 0.0
        %290 = vmatpush2.xpose.msra.mxu0 0.0
        %291 = vmatprep.subr.mxu0 0.0
        %292 = vmatpush2.xpose.msra.mxu0 0.0
        %293 = vmatprep.subr.mxu0 0.0
        %294 = vmatpush2.xpose.msra.mxu0 0.0
        %295 = vmatprep.subr.mxu0 0.0
        %296 = vmatpush2.xpose.msra.mxu0 0.0
        %297 = vmatprep.subr.mxu0 0.0
        %298 = vmatpush2.xpose.msra.mxu0 0.0
        %299 = vmatprep.subr.mxu0 0.0
        %300 = vmatpush2.xpose.msra.mxu0 0.0
        %301 = vmatprep.subr.mxu0 0.0
        %302 = vmatpush2.xpose.msra.mxu0 0.0
        %303 = vmatprep.subr.mxu0 0.0
        %304 = vmatpush2.xpose.msra.mxu0 0.0
        %305 = vmatprep.subr.mxu0 0.0
        %306 = vmatpush2.xpose.msra.mxu0 0.0
        %307 = vmatprep.subr.mxu0 0.0
        %308 = vmatpush2.xpose.msra.mxu0 0.0
        %309 = vmatprep.subr.mxu0 0.0
        %310 = vmatpush2.xpose.msra.mxu0 0.0
        %311 = vmatprep.subr.mxu0 0.0
        %312 = vmatpush2.xpose.msra.mxu0 0.0
        %313 = vmatprep.subr.mxu0 0.0
        %314 = vmatpush2.xpose.msra.mxu0 0.0
        %315 = vmatprep.subr.mxu0 0.0
        %316 = vmatpush2.xpose.msra.mxu0 0.0
        %317 = vmatprep.subr.mxu0 0.0
        %318 = vmatpush2.xpose.msra.mxu0 0.0
        %319 = vmatprep.mubr.f32.mxu0 0.0
        %320 = vmatmul.mubr.f32.gmra.mxu0 %v247
        %v321 = vpop.f32.mrf.mxu0
        %v322 = vadd.f32 0.0, %v321
        %v323 = vpop.f32.mrf.mxu0
        %324 = vdwg.mxu0
        %v325 = vtanh.pop %v322
        %v326 = vld [vmem:[%s3] sm:$0xf]
        %vm327 = vcmask 130048
        %v329 = vsel %vm327, %v326, 0
        %v332 = vsel %vm327, %v325, 0
        %334 = vmatprep.subr.mxu0 0.0
        %335 = vmatpush1.xpose.msra.mxu0 0.0
        %336 = vmatprep.subr.mxu0 0.0
        %337 = vmatpush1.xpose.msra.mxu0 0.0
        %338 = vmatprep.subr.mxu0 0.0
        %339 = vmatpush1.xpose.msra.mxu0 0.0
        %340 = vmatprep.subr.mxu0 0.0
        %341 = vmatpush1.xpose.msra.mxu0 0.0
        %342 = vmatprep.subr.mxu0 0.0
        %343 = vmatpush1.xpose.msra.mxu0 0.0
        %344 = vmatprep.subr.mxu0 0.0
        %345 = vmatpush1.xpose.msra.mxu0 0.0
        %346 = vmatprep.subr.mxu0 0.0
        %347 = vmatpush1.xpose.msra.mxu0 0.0
        %348 = vmatprep.subr.mxu0 0.0
        %349 = vmatpush1.xpose.msra.mxu0 0.0
        %350 = vmatprep.subr.mxu0 0.0
        %351 = vmatpush1.xpose.msra.mxu0 0.0
        %352 = vmatprep.subr.mxu0 0.0
        %353 = vmatpush1.xpose.msra.mxu0 0.0
        %354 = vmatprep.subr.mxu0 0.0
        %355 = vmatpush1.xpose.msra.mxu0 0.0
        %356 = vmatprep.subr.mxu0 0.0
        %357 = vmatpush1.xpose.msra.mxu0 0.0
        %358 = vmatprep.subr.mxu0 0.0
        %359 = vmatpush1.xpose.msra.mxu0 0.0
        %360 = vmatprep.subr.mxu0 0.0
        %361 = vmatpush1.xpose.msra.mxu0 0.0
        %362 = vmatprep.subr.mxu0 0.0
        %363 = vmatpush1.xpose.msra.mxu0 0.0
        %364 = vmatprep.subr.mxu0 0.0
        %365 = vmatpush1.xpose.msra.mxu0 %v332
        %366 = vmatprep.subr.mxu0 0.0
        %367 = vmatpush2.xpose.msra.mxu0 0.0
        %368 = vmatprep.subr.mxu0 0.0
        %369 = vmatpush2.xpose.msra.mxu0 0.0
        %370 = vmatprep.subr.mxu0 0.0
        %371 = vmatpush2.xpose.msra.mxu0 0.0
        %372 = vmatprep.subr.mxu0 0.0
        %373 = vmatpush2.xpose.msra.mxu0 0.0
        %374 = vmatprep.subr.mxu0 0.0
        %375 = vmatpush2.xpose.msra.mxu0 0.0
        %376 = vmatprep.subr.mxu0 0.0
        %377 = vmatpush2.xpose.msra.mxu0 0.0
        %378 = vmatprep.subr.mxu0 0.0
        %379 = vmatpush2.xpose.msra.mxu0 0.0
        %380 = vmatprep.subr.mxu0 0.0
        %381 = vmatpush2.xpose.msra.mxu0 0.0
        %382 = vmatprep.subr.mxu0 0.0
        %383 = vmatpush2.xpose.msra.mxu0 0.0
        %384 = vmatprep.subr.mxu0 0.0
        %385 = vmatpush2.xpose.msra.mxu0 0.0
        %386 = vmatprep.subr.mxu0 0.0
        %387 = vmatpush2.xpose.msra.mxu0 0.0
        %388 = vmatprep.subr.mxu0 0.0
        %389 = vmatpush2.xpose.msra.mxu0 0.0
        %390 = vmatprep.subr.mxu0 0.0
        %391 = vmatpush2.xpose.msra.mxu0 0.0
        %392 = vmatprep.subr.mxu0 0.0
        %393 = vmatpush2.xpose.msra.mxu0 0.0
        %394 = vmatprep.subr.mxu0 0.0
        %395 = vmatpush2.xpose.msra.mxu0 0.0
        %396 = vmatprep.subr.mxu0 0.0
        %397 = vmatpush2.xpose.msra.mxu0 0.0
        %398 = vmatprep.mubr.f32.mxu0 0.0
        %399 = vmatmul.mubr.f32.gmra.mxu0 %v329
        %v400 = vpop.f32.mrf.mxu0
        %v401 = vadd.f32 0.0, %v400
        %v402 = vpop.f32.mrf.mxu0
        %403 = vdwg.mxu0
        %v406 = vunpack.c.l.s4 1966171168
        %v407 = vunpack.c.0.s8 %v406
        %v408 = vlaneseq
        %v409 = vshrl.u32 %v408, 7
        %v410 = vsub.s32 %v407, %v409
        %v411 = vrot.slane %v401, %v410
        %v412 = vcombine.high %v411, %v411
        %v414 = vunpack.c.l.s4 1966171168
        %v415 = vunpack.c.0.s8 %v414
        %v416 = vlaneseq
        %v417 = vshrl.u32 %v416, 7
        %v418 = vsub.s32 %v415, %v417
        %v419 = vrot.slane %v411, %v418
        %v421 = vunpack.c.l.s4 1966171168
        %v422 = vunpack.c.0.s8 %v421
        %v423 = vlaneseq
        %v424 = vshrl.u32 %v423, 7
        %v425 = vsub.s32 %v422, %v424
        %v426 = vrot.slane %v412, %v425
        %v427 = vcombine.high %v419, %v419
        %v428 = vcombine.high %v426, %v426
        %v429 = vlaneseq
        %v430 = vand.u32 %v429, 127
        %v431 = vld [vmem:[%s241] sm:$0x1]
        %v432 = vlaneseq
        %v433 = vshrl.u32 %v432, 7
        %v434 = vsub.s32 0, %v433
        %v435 = vrot.slane %v431, %v434
        %436 = vset.pattern.permute.xlu0 0
        %437 = vperm.xlu0 %436, %v435
        %v438 = vpop.permute.xlu0 %437
        %vm439 = vcmp.ge.s32.totalorder %v430, %v438
        %v440 = vcombine.low %v419, %v426
        %v441 = vcombine.low %v427, %v428
        %v443 = vunpack.c.l.s4 1966171168
        %v444 = vunpack.c.0.s8 %v443
        %v445 = vlaneseq
        %v446 = vshrl.u32 %v445, 7
        %v447 = vsub.s32 %v444, %v446
        %v448 = vrot.slane %v440, %v447
        %v450 = vunpack.c.l.s4 1966171168
        %v451 = vunpack.c.0.s8 %v450
        %v452 = vlaneseq
        %v453 = vshrl.u32 %v452, 7
        %v454 = vsub.s32 %v451, %v453
        %v455 = vrot.slane %v441, %v454
        %v456 = vcombine.low %v448, %v455
        %v458 = vunpack.c.l.s4 1966171168
        %v459 = vunpack.c.0.s8 %v458
        %v460 = vlaneseq
        %v461 = vshrl.u32 %v460, 7
        %v462 = vsub.s32 %v459, %v461
        %v463 = vrot.slane %v456, %v462
        %v465 = vsel %vm439, -1e+30, %v463
        %vm466 = vcmask 60416
        %v467 = vsel %vm466, %v465, -inf
        %468 = vmax.xlane.f32.xlu0 %v467
        %v469 = vpop.xlane.xlu0 %468
        %v470 = vsub.f32 %v465, %v469
        %v471 = vmul.f32 %v470, 1.442695
        %v472 = vpow.pop %v471
        %v473 = vsel %vm466, %v472, 0.0
        %474 = vadd.xlane.f32.xlu0 %v473
        %v475 = vpop.xlane.xlu0 %474
        %v476 = vrcp.pop %v475
        %v477 = vmul.f32 %v472, %v476
        %478 = vst.msk [vmem:[%s238] sm:$0xf] %vm466, %v477
        %s479 = sand.u32 %s124, 1
        %s480 = scalar_lea.sflag [#allocation4], %s479
        %s481 = sand.u32 %s124, 1
        %s482 = smul.addr %s481, 4
        %s483 = scalar_lea.vmem [#allocation7], %s482
        // Predicated region
        $region45: #{tpu_custom_call.1} parent=35 // pred_check
          %p484 = pneg %p134
        $region46: #{tpu_custom_call.1} parent=35 // pred_check_branch
          %486 = sbr.rel (%p484) target = $region48
        $region47: #{tpu_custom_call.1} parent=35 // pred_region
          %s488 = ssub.s32 64, 64
          %489 = vsyncadd %s480, %s488
          %s490 = smul.addr %s22, 64
          %s491 = scalar_lea.hbm %s4, %s490
          %s493 = sshll.u32 %s483, 4
          %s494 = int_to_ptr.vmem [resolvable:$true] %s493
          %496 = dma.vmem_to_hbm [thread:$0]  %s494, 64, %s491, %s480
        $region48: #{tpu_custom_call.1} parent=35 // pred_fallthru
          _
      $region36: #{tpu_custom_call.1} parent=5 // pred_fallthru
        _
      %p497 = scmp.le.s32.totalorder 2, %s17
      // Predicated region
      $region49: #{tpu_custom_call.1} parent=5 // pred_check
        %p498 = pneg %p497
      $region50: #{tpu_custom_call.1} parent=5 // pred_check_branch
        %500 = sbr.rel (%p498) target = $region52
      $region51: #{tpu_custom_call.1} parent=5 // pred_region
        %s501 = ssub.s32 %s17, 2
        // Predicated region
        $region53: #{tpu_custom_call.1} parent=51 // pred_check
          %p502 = pneg %p140
        $region54: #{tpu_custom_call.1} parent=51 // pred_check_branch
          %504 = sbr.rel (%p502) target = $region56
        $region55: #{tpu_custom_call.1} parent=51 // pred_region
          %s505 = sand.u32 %s125, 1
          %s506 = scalar_lea.sflag [#allocation4], %s505
          %s507 = sand.u32 %s125, 1
          %s508 = smul.addr %s507, 4
          %s509 = scalar_lea.vmem [#allocation7], %s508
          %510 = dma.done %s506, 64
        $region56: #{tpu_custom_call.1} parent=51 // pred_fallthru
          _
      $region52: #{tpu_custom_call.1} parent=5 // pred_fallthru
        _
    $region6: #{tpu_custom_call.1} parent=1 // loop_footer
      %s21 = sadd.s32 1, %s17
    $region7: #{tpu_custom_call.1} parent=1 // loop_footer_branch
      %16 = sbr.rel target = $region3
    $region8: #{tpu_custom_call.1} parent=1 // loop_exit
      _
    %511 = vsyncpa [#allocation3], 1
    %s512 = scalar_lea.sflag [#allocation3], 1
    %513 = vsyncpa %s512, 1
    %514 = vsyncpa [#allocation6], 1
    %515 = vsyncpa [#allocation4], 1
    %s516 = scalar_lea.sflag [#allocation4], 1
    %517 = vsyncpa %s516, 1

</llo_original>
